<compile_context>
chip_gen: v5e
topology: v5e:2x2
jax: 0.10.0
libtpu: 0.0.40
codegen_flags: <defaults>
</compile_context>

<pallas_src>
import jax
import jax.numpy as jnp
from jax.experimental import pallas as pl
from jax.experimental.pallas import tpu as pltpu


def _round_up(x, m):
    return ((x + m - 1) // m) * m


def mlp_kernel(x_ref, w1_ref, b1_ref, w2_ref, b2_ref, w3_ref, b3_ref, o_ref):
    # fc1 -> relu   (bf16 operands, f32 accumulation)
    x = x_ref[...]
    h1 = jnp.dot(x, w1_ref[...], preferred_element_type=jnp.float32) + b1_ref[...]
    h1 = jnp.maximum(h1, 0.0)

    # fc2 -> relu
    h2 = jnp.dot(h1.astype(w2_ref.dtype), w2_ref[...],
                 preferred_element_type=jnp.float32) + b2_ref[...]
    h2 = jnp.maximum(h2, 0.0)

    # fc3 logits: padded output columns carry a -1e30 bias so exp() underflows to 0
    logits = jnp.dot(h2.astype(w3_ref.dtype), w3_ref[...],
                     preferred_element_type=jnp.float32) + b3_ref[...]

    # numerically-stable softmax in f32 over the padded, lane-dense last dim
    m = jnp.max(logits, axis=-1, keepdims=True)
    e = jnp.exp(logits - m)
    denom = jnp.sum(e, axis=-1, keepdims=True)
    o_ref[...] = (e * pl.reciprocal(denom, approx=True)).astype(o_ref.dtype)


def mlp_forward(x, params, *, batch_tile=None, compute_dtype=jnp.bfloat16):
    """x: (B, input_dim) float32. params: PyTorch-convention weights (out, in) / (out,)."""
    B, input_dim = x.shape
    hidden_dim = params["w1"].shape[0]
    output_dim = params["w3"].shape[0]

    # ---- lane-dense padding of feature dims (multiples of 128) ----
    H = _round_up(hidden_dim, 128)
    O = _round_up(output_dim, 128)
    NEG = jnp.float32(-1e30)  # pad bias for invalid logit columns

    w1t = jnp.zeros((input_dim, H), compute_dtype).at[:, :hidden_dim].set(
        params["w1"].T.astype(compute_dtype))
    w2t = jnp.zeros((H, H), compute_dtype).at[:hidden_dim, :hidden_dim].set(
        params["w2"].T.astype(compute_dtype))
    w3t = jnp.zeros((H, O), compute_dtype).at[:hidden_dim, :output_dim].set(
        params["w3"].T.astype(compute_dtype))
    b1 = jnp.zeros((1, H), jnp.float32).at[0, :hidden_dim].set(params["b1"].astype(jnp.float32))
    b2 = jnp.zeros((1, H), jnp.float32).at[0, :hidden_dim].set(params["b2"].astype(jnp.float32))
    b3 = jnp.full((1, O), NEG, jnp.float32).at[0, :output_dim].set(params["b3"].astype(jnp.float32))

    # ---- batch tiling: >= 2 grid steps when possible, rows a multiple of 16 ----
    if batch_tile is None:
        batch_tile = 256
        if B <= batch_tile:
            batch_tile = max(16, _round_up(pl.cdiv(B, 2), 16))
    batch_tile = _round_up(batch_tile, 16)
    Bp = _round_up(B, batch_tile)
    xp = jnp.zeros((Bp, input_dim), compute_dtype).at[:B, :].set(x.astype(compute_dtype))
    grid = (Bp // batch_tile,)

    # ---- rough VMEM budget; only raise the scoped limit if we actually need it ----
    wsz = jnp.dtype(compute_dtype).itemsize
    weight_bytes = (w1t.size + w2t.size + w3t.size) * wsz + (b1.size + b2.size + b3.size) * 4
    stream_bytes = 2 * batch_tile * input_dim * wsz + 2 * batch_tile * O * 4
    act_bytes = 4 * batch_tile * max(H, O) * 4
    need = weight_bytes + stream_bytes + act_bytes
    vmem_limit = None if need <= 32 * 1024 * 1024 else min(int(1.5 * need), 100 * 1024 * 1024)

    def run(single_buffer_weights):
        def wspec(shape):
            if single_buffer_weights:
                # constant index_map -> no need for double-buffering these blocks
                return pl.BlockSpec(shape, lambda i: (0, 0), pipeline_mode=pl.Buffered(1))
            return pl.BlockSpec(shape, lambda i: (0, 0))

        return pl.pallas_call(
            mlp_kernel,
            out_shape=jax.ShapeDtypeStruct((Bp, O), jnp.float32),
            grid_spec=pltpu.PrefetchScalarGridSpec(
                num_scalar_prefetch=0,
                grid=grid,
                in_specs=[
                    pl.BlockSpec((batch_tile, input_dim), lambda i: (i, 0)),  # x tile (streamed)
                    wspec((input_dim, H)),  # w1^T
                    wspec((1, H)),          # b1
                    wspec((H, H)),          # w2^T
                    wspec((1, H)),          # b2
                    wspec((H, O)),          # w3^T
                    wspec((1, O)),          # b3 (padded lanes = -1e30)
                ],
                out_specs=pl.BlockSpec((batch_tile, O), lambda i: (i, 0)),
            ),
            compiler_params=pltpu.CompilerParams(
                dimension_semantics=("parallel",),
                vmem_limit_bytes=vmem_limit,
            ),
        )(xp, w1t, b1, w2t, b2, w3t, b3)

    try:
        out = run(single_buffer_weights=True)
    except Exception:
        # Fallback if this jax version rejects pipeline_mode / Buffered(1).
        out = run(single_buffer_weights=False)

    return out[:B, :output_dim]


def init_params(key, input_dim, hidden_dim, output_dim):
    """Deterministic init; mimics nn.Linear's U(-1/sqrt(fan_in), 1/sqrt(fan_in))."""
    ks = jax.random.split(key, 6)

    def linear(kw, kb, fan_in, fan_out):
        bound = 1.0 / jnp.sqrt(fan_in)
        w = jax.random.uniform(kw, (fan_out, fan_in), jnp.float32, -bound, bound)
        b = jax.random.uniform(kb, (fan_out,), jnp.float32, -bound, bound)
        return w, b

    w1, b1 = linear(ks[0], ks[1], input_dim, hidden_dim)
    w2, b2 = linear(ks[2], ks[3], hidden_dim, hidden_dim)
    w3, b3 = linear(ks[4], ks[5], hidden_dim, output_dim)
    return {"w1": w1, "b1": b1, "w2": w2, "b2": b2, "w3": w3, "b3": b3}


def mlp_reference(x, p):
    h1 = jax.nn.relu(x @ p["w1"].T + p["b1"])
    h2 = jax.nn.relu(h1 @ p["w2"].T + p["b2"])
    return jax.nn.softmax(h2 @ p["w3"].T + p["b3"], axis=-1)


if __name__ == "__main__":
    batch, input_dim, hidden_dim, output_dim = 64, 16, 32, 10

    key = jax.random.PRNGKey(0)
    kx, kp = jax.random.split(key)
    x = jax.random.normal(kx, (batch, input_dim), dtype=jnp.float32)
    params = init_params(kp, input_dim, hidden_dim, output_dim)

    out = mlp_forward(x, params)   # default tiling -> 2 grid steps of 32 rows
    out = jax.block_until_ready(out)

    ref = mlp_reference(x, params)
    assert out.shape == (batch, output_dim)
    # bf16 matmuls with f32 accumulation: loose tolerance vs the f32 reference
    assert bool(jnp.allclose(out, ref, atol=3e-2, rtol=5e-2))
    assert bool(jnp.allclose(out.sum(axis=-1), 1.0, atol=5e-3))

    print("KERNEL_OK")
</pallas_src>

<mosaic_0001>
module attributes {stable_mosaic.version = 11 : i64} {
  func.func @mlp_kernel(%arg0: i32, %arg1: memref<32x16xbf16, #tpu.memory_space<vmem>>, %arg2: memref<16x128xbf16, #tpu.memory_space<vmem>>, %arg3: memref<1x128xf32, #tpu.memory_space<vmem>>, %arg4: memref<128x128xbf16, #tpu.memory_space<vmem>>, %arg5: memref<1x128xf32, #tpu.memory_space<vmem>>, %arg6: memref<128x128xbf16, #tpu.memory_space<vmem>>, %arg7: memref<1x128xf32, #tpu.memory_space<vmem>>, %arg8: memref<32x128xf32, #tpu.memory_space<vmem>>) attributes {dimension_semantics = [#tpu.dimension_semantics<parallel>], iteration_bounds = array<i64: 2>, scalar_prefetch = 0 : i64, scratch_operands = 0 : i64, tpu.core_type = #tpu.core_type<tc>, window_params = [{transform_indices = @transform_0, window_bounds = array<i64: 32, 16>}, {pipeline_mode = #tpu.pipeline_mode<synchronous>, transform_indices = @transform_1, window_bounds = array<i64: 16, 128>}, {pipeline_mode = #tpu.pipeline_mode<synchronous>, transform_indices = @transform_2, window_bounds = array<i64: 1, 128>}, {pipeline_mode = #tpu.pipeline_mode<synchronous>, transform_indices = @transform_3, window_bounds = array<i64: 128, 128>}, {pipeline_mode = #tpu.pipeline_mode<synchronous>, transform_indices = @transform_4, window_bounds = array<i64: 1, 128>}, {pipeline_mode = #tpu.pipeline_mode<synchronous>, transform_indices = @transform_5, window_bounds = array<i64: 128, 128>}, {pipeline_mode = #tpu.pipeline_mode<synchronous>, transform_indices = @transform_6, window_bounds = array<i64: 1, 128>}, {transform_indices = @transform_7, window_bounds = array<i64: 32, 128>}]} {
    %c0 = arith.constant 0 : index
    %c0_0 = arith.constant 0 : index
    %0 = vector.load %arg1[%c0, %c0_0] : memref<32x16xbf16, #tpu.memory_space<vmem>>, vector<32x16xbf16>
    %c0_1 = arith.constant 0 : index
    %c0_2 = arith.constant 0 : index
    %1 = vector.load %arg2[%c0_1, %c0_2] : memref<16x128xbf16, #tpu.memory_space<vmem>>, vector<16x128xbf16>
    %cst = arith.constant dense<0.000000e+00> : vector<32x128xf32>
    %2 = tpu.matmul %0, %1, %cst {dimension_numbers = #tpu.dot_dimension_numbers<[1], [0], [0], [1], [0, 0, 1, 1], [], []>} : vector<32x16xbf16>, vector<16x128xbf16>, vector<32x128xf32> -> vector<32x128xf32>
    %c0_3 = arith.constant 0 : index
    %c0_4 = arith.constant 0 : index
    %3 = vector.load %arg3[%c0_3, %c0_4] : memref<1x128xf32, #tpu.memory_space<vmem>>, vector<1x128xf32>
    %4 = vector.broadcast %3 : vector<1x128xf32> to vector<32x128xf32>
    %5 = arith.addf %2, %4 : vector<32x128xf32>
    %cst_5 = arith.constant 0.000000e+00 : f32
    %6 = vector.broadcast %cst_5 : f32 to vector<32x128xf32>
    %7 = arith.maximumf %5, %6 : vector<32x128xf32>
    %8 = arith.truncf %7 : vector<32x128xf32> to vector<32x128xbf16>
    %c0_6 = arith.constant 0 : index
    %c0_7 = arith.constant 0 : index
    %9 = vector.load %arg4[%c0_6, %c0_7] : memref<128x128xbf16, #tpu.memory_space<vmem>>, vector<128x128xbf16>
    %cst_8 = arith.constant dense<0.000000e+00> : vector<32x128xf32>
    %10 = tpu.matmul %8, %9, %cst_8 {dimension_numbers = #tpu.dot_dimension_numbers<[1], [0], [0], [1], [0, 0, 1, 1], [], []>} : vector<32x128xbf16>, vector<128x128xbf16>, vector<32x128xf32> -> vector<32x128xf32>
    %c0_9 = arith.constant 0 : index
    %c0_10 = arith.constant 0 : index
    %11 = vector.load %arg5[%c0_9, %c0_10] : memref<1x128xf32, #tpu.memory_space<vmem>>, vector<1x128xf32>
    %12 = vector.broadcast %11 : vector<1x128xf32> to vector<32x128xf32>
    %13 = arith.addf %10, %12 : vector<32x128xf32>
    %cst_11 = arith.constant 0.000000e+00 : f32
    %14 = vector.broadcast %cst_11 : f32 to vector<32x128xf32>
    %15 = arith.maximumf %13, %14 : vector<32x128xf32>
    %16 = arith.truncf %15 : vector<32x128xf32> to vector<32x128xbf16>
    %c0_12 = arith.constant 0 : index
    %c0_13 = arith.constant 0 : index
    %17 = vector.load %arg6[%c0_12, %c0_13] : memref<128x128xbf16, #tpu.memory_space<vmem>>, vector<128x128xbf16>
    %cst_14 = arith.constant dense<0.000000e+00> : vector<32x128xf32>
    %18 = tpu.matmul %16, %17, %cst_14 {dimension_numbers = #tpu.dot_dimension_numbers<[1], [0], [0], [1], [0, 0, 1, 1], [], []>} : vector<32x128xbf16>, vector<128x128xbf16>, vector<32x128xf32> -> vector<32x128xf32>
    %c0_15 = arith.constant 0 : index
    %c0_16 = arith.constant 0 : index
    %19 = vector.load %arg7[%c0_15, %c0_16] : memref<1x128xf32, #tpu.memory_space<vmem>>, vector<1x128xf32>
    %20 = vector.broadcast %19 : vector<1x128xf32> to vector<32x128xf32>
    %21 = arith.addf %18, %20 : vector<32x128xf32>
    %cst_17 = arith.constant dense<0xFF800000> : vector<32xf32>
    %22 = vector.multi_reduction <maximumf>, %21, %cst_17 [1] : vector<32x128xf32> to vector<32xf32>
    %23 = vector.shape_cast %22 : vector<32xf32> to vector<32x1xf32>
    %24 = vector.broadcast %23 : vector<32x1xf32> to vector<32x128xf32>
    %25 = arith.subf %21, %24 : vector<32x128xf32>
    %26 = math.exp %25 : vector<32x128xf32>
    %cst_18 = arith.constant dense<0.000000e+00> : vector<32xf32>
    %27 = vector.multi_reduction <add>, %26, %cst_18 [1] : vector<32x128xf32> to vector<32xf32>
    %28 = vector.shape_cast %27 : vector<32xf32> to vector<32x1xf32>
    %29 = tpu.reciprocal %28 {approx = true} : vector<32x1xf32> -> vector<32x1xf32>
    %30 = vector.broadcast %29 : vector<32x1xf32> to vector<32x128xf32>
    %31 = arith.mulf %26, %30 : vector<32x128xf32>
    %c0_19 = arith.constant 0 : index
    %c0_20 = arith.constant 0 : index
    %32 = vector.load %arg8[%c0_19, %c0_20] : memref<32x128xf32, #tpu.memory_space<vmem>>, vector<32x128xf32>
    tpu.vector_store %arg8[%c0_19, %c0_20], %31 {strides = array<i32>} : memref<32x128xf32, #tpu.memory_space<vmem>>, vector<32x128xf32>,
    return
  }
  func.func @transform_0(%arg0: i32) -> (i32, i32) {
    %c0_i32 = arith.constant 0 : i32
    %c0_i32_0 = arith.constant 0 : i32
    return %arg0, %c0_i32 : i32, i32
  }
  func.func @transform_1(%arg0: i32) -> (i32, i32) {
    %c0_i32 = arith.constant 0 : i32
    %c0_i32_0 = arith.constant 0 : i32
    %c0_i32_1 = arith.constant 0 : i32
    return %c0_i32, %c0_i32_0 : i32, i32
  }
  func.func @transform_2(%arg0: i32) -> (i32, i32) {
    %c0_i32 = arith.constant 0 : i32
    %c0_i32_0 = arith.constant 0 : i32
    %c0_i32_1 = arith.constant 0 : i32
    return %c0_i32, %c0_i32_0 : i32, i32
  }
  func.func @transform_3(%arg0: i32) -> (i32, i32) {
    %c0_i32 = arith.constant 0 : i32
    %c0_i32_0 = arith.constant 0 : i32
    %c0_i32_1 = arith.constant 0 : i32
    return %c0_i32, %c0_i32_0 : i32, i32
  }
  func.func @transform_4(%arg0: i32) -> (i32, i32) {
    %c0_i32 = arith.constant 0 : i32
    %c0_i32_0 = arith.constant 0 : i32
    %c0_i32_1 = arith.constant 0 : i32
    return %c0_i32, %c0_i32_0 : i32, i32
  }
  func.func @transform_5(%arg0: i32) -> (i32, i32) {
    %c0_i32 = arith.constant 0 : i32
    %c0_i32_0 = arith.constant 0 : i32
    %c0_i32_1 = arith.constant 0 : i32
    return %c0_i32, %c0_i32_0 : i32, i32
  }
  func.func @transform_6(%arg0: i32) -> (i32, i32) {
    %c0_i32 = arith.constant 0 : i32
    %c0_i32_0 = arith.constant 0 : i32
    %c0_i32_1 = arith.constant 0 : i32
    return %c0_i32, %c0_i32_0 : i32, i32
  }
  func.func @transform_7(%arg0: i32) -> (i32, i32) {
    %c0_i32 = arith.constant 0 : i32
    %c0_i32_0 = arith.constant 0 : i32
    return %arg0, %c0_i32 : i32, i32
  }
}

module attributes {stable_mosaic.version = 11 : i64} {
  func.func @mlp_kernel(%arg0: i32, %arg1: memref<32x16xbf16, #tpu.memory_space<vmem>>, %arg2: memref<16x128xbf16, #tpu.memory_space<vmem>>, %arg3: memref<1x128xf32, #tpu.memory_space<vmem>>, %arg4: memref<128x128xbf16, #tpu.memory_space<vmem>>, %arg5: memref<1x128xf32, #tpu.memory_space<vmem>>, %arg6: memref<128x128xbf16, #tpu.memory_space<vmem>>, %arg7: memref<1x128xf32, #tpu.memory_space<vmem>>, %arg8: memref<32x128xf32, #tpu.memory_space<vmem>>) attributes {dimension_semantics = [#tpu.dimension_semantics<parallel>], iteration_bounds = array<i64: 2>, scalar_prefetch = 0 : i64, scratch_operands = 0 : i64, tpu.core_type = #tpu.core_type<tc>, window_params = [{transform_indices = @transform_0, window_bounds = array<i64: 32, 16>}, {pipeline_mode = #tpu.pipeline_mode<synchronous>, transform_indices = @transform_1, window_bounds = array<i64: 16, 128>}, {pipeline_mode = #tpu.pipeline_mode<synchronous>, transform_indices = @transform_2, window_bounds = array<i64: 1, 128>}, {pipeline_mode = #tpu.pipeline_mode<synchronous>, transform_indices = @transform_3, window_bounds = array<i64: 128, 128>}, {pipeline_mode = #tpu.pipeline_mode<synchronous>, transform_indices = @transform_4, window_bounds = array<i64: 1, 128>}, {pipeline_mode = #tpu.pipeline_mode<synchronous>, transform_indices = @transform_5, window_bounds = array<i64: 128, 128>}, {pipeline_mode = #tpu.pipeline_mode<synchronous>, transform_indices = @transform_6, window_bounds = array<i64: 1, 128>}, {transform_indices = @transform_7, window_bounds = array<i64: 32, 128>}]} {
    %c0 = arith.constant 0 : index
    %c0_0 = arith.constant 0 : index
    %0 = vector.load %arg1[%c0, %c0_0] : memref<32x16xbf16, #tpu.memory_space<vmem>>, vector<32x16xbf16>
    %c0_1 = arith.constant 0 : index
    %c0_2 = arith.constant 0 : index
    %1 = vector.load %arg2[%c0_1, %c0_2] : memref<16x128xbf16, #tpu.memory_space<vmem>>, vector<16x128xbf16>
    %cst = arith.constant dense<0.000000e+00> : vector<32x128xf32>
    %2 = tpu.matmul %0, %1, %cst {dimension_numbers = #tpu.dot_dimension_numbers<[1], [0], [0], [1], [0, 0, 1, 1], [], []>} : vector<32x16xbf16>, vector<16x128xbf16>, vector<32x128xf32> -> vector<32x128xf32>
    %c0_3 = arith.constant 0 : index
    %c0_4 = arith.constant 0 : index
    %3 = vector.load %arg3[%c0_3, %c0_4] : memref<1x128xf32, #tpu.memory_space<vmem>>, vector<1x128xf32>
    %4 = vector.broadcast %3 : vector<1x128xf32> to vector<32x128xf32>
    %5 = arith.addf %2, %4 : vector<32x128xf32>
    %cst_5 = arith.constant 0.000000e+00 : f32
    %6 = vector.broadcast %cst_5 : f32 to vector<32x128xf32>
    %7 = arith.maximumf %5, %6 : vector<32x128xf32>
    %8 = arith.truncf %7 : vector<32x128xf32> to vector<32x128xbf16>
    %c0_6 = arith.constant 0 : index
    %c0_7 = arith.constant 0 : index
    %9 = vector.load %arg4[%c0_6, %c0_7] : memref<128x128xbf16, #tpu.memory_space<vmem>>, vector<128x128xbf16>
    %cst_8 = arith.constant dense<0.000000e+00> : vector<32x128xf32>
    %10 = tpu.matmul %8, %9, %cst_8 {dimension_numbers = #tpu.dot_dimension_numbers<[1], [0], [0], [1], [0, 0, 1, 1], [], []>} : vector<32x128xbf16>, vector<128x128xbf16>, vector<32x128xf32> -> vector<32x128xf32>
    %c0_9 = arith.constant 0 : index
    %c0_10 = arith.constant 0 : index
    %11 = vector.load %arg5[%c0_9, %c0_10] : memref<1x128xf32, #tpu.memory_space<vmem>>, vector<1x128xf32>
    %12 = vector.broadcast %11 : vector<1x128xf32> to vector<32x128xf32>
    %13 = arith.addf %10, %12 : vector<32x128xf32>
    %cst_11 = arith.constant 0.000000e+00 : f32
    %14 = vector.broadcast %cst_11 : f32 to vector<32x128xf32>
    %15 = arith.maximumf %13, %14 : vector<32x128xf32>
    %16 = arith.truncf %15 : vector<32x128xf32> to vector<32x128xbf16>
    %c0_12 = arith.constant 0 : index
    %c0_13 = arith.constant 0 : index
    %17 = vector.load %arg6[%c0_12, %c0_13] : memref<128x128xbf16, #tpu.memory_space<vmem>>, vector<128x128xbf16>
    %cst_14 = arith.constant dense<0.000000e+00> : vector<32x128xf32>
    %18 = tpu.matmul %16, %17, %cst_14 {dimension_numbers = #tpu.dot_dimension_numbers<[1], [0], [0], [1], [0, 0, 1, 1], [], []>} : vector<32x128xbf16>, vector<128x128xbf16>, vector<32x128xf32> -> vector<32x128xf32>
    %c0_15 = arith.constant 0 : index
    %c0_16 = arith.constant 0 : index
    %19 = vector.load %arg7[%c0_15, %c0_16] : memref<1x128xf32, #tpu.memory_space<vmem>>, vector<1x128xf32>
    %20 = vector.broadcast %19 : vector<1x128xf32> to vector<32x128xf32>
    %21 = arith.addf %18, %20 : vector<32x128xf32>
    %cst_17 = arith.constant dense<0xFF800000> : vector<32xf32>
    %22 = vector.multi_reduction <maximumf>, %21, %cst_17 [1] : vector<32x128xf32> to vector<32xf32>
    %23 = vector.shape_cast %22 : vector<32xf32> to vector<32x1xf32>
    %24 = vector.broadcast %23 : vector<32x1xf32> to vector<32x128xf32>
    %25 = arith.subf %21, %24 : vector<32x128xf32>
    %26 = math.exp %25 : vector<32x128xf32>
    %cst_18 = arith.constant dense<0.000000e+00> : vector<32xf32>
    %27 = vector.multi_reduction <add>, %26, %cst_18 [1] : vector<32x128xf32> to vector<32xf32>
    %28 = vector.shape_cast %27 : vector<32xf32> to vector<32x1xf32>
    %29 = tpu.reciprocal %28 {approx = true} : vector<32x1xf32> -> vector<32x1xf32>
    %30 = vector.broadcast %29 : vector<32x1xf32> to vector<32x128xf32>
    %31 = arith.mulf %26, %30 : vector<32x128xf32>
    %c0_19 = arith.constant 0 : index
    %c0_20 = arith.constant 0 : index
    %32 = vector.load %arg8[%c0_19, %c0_20] : memref<32x128xf32, #tpu.memory_space<vmem>>, vector<32x128xf32>
    tpu.vector_store %arg8[%c0_19, %c0_20], %31 {strides = array<i32>} : memref<32x128xf32, #tpu.memory_space<vmem>>, vector<32x128xf32>,
    return
  }
  func.func @transform_0(%arg0: i32) -> (i32, i32) {
    %c0_i32 = arith.constant 0 : i32
    %c0_i32_0 = arith.constant 0 : i32
    return %arg0, %c0_i32 : i32, i32
  }
  func.func @transform_1(%arg0: i32) -> (i32, i32) {
    %c0_i32 = arith.constant 0 : i32
    %c0_i32_0 = arith.constant 0 : i32
    %c0_i32_1 = arith.constant 0 : i32
    return %c0_i32, %c0_i32_0 : i32, i32
  }
  func.func @transform_2(%arg0: i32) -> (i32, i32) {
    %c0_i32 = arith.constant 0 : i32
    %c0_i32_0 = arith.constant 0 : i32
    %c0_i32_1 = arith.constant 0 : i32
    return %c0_i32, %c0_i32_0 : i32, i32
  }
  func.func @transform_3(%arg0: i32) -> (i32, i32) {
    %c0_i32 = arith.constant 0 : i32
    %c0_i32_0 = arith.constant 0 : i32
    %c0_i32_1 = arith.constant 0 : i32
    return %c0_i32, %c0_i32_0 : i32, i32
  }
  func.func @transform_4(%arg0: i32) -> (i32, i32) {
    %c0_i32 = arith.constant 0 : i32
    %c0_i32_0 = arith.constant 0 : i32
    %c0_i32_1 = arith.constant 0 : i32
    return %c0_i32, %c0_i32_0 : i32, i32
  }
  func.func @transform_5(%arg0: i32) -> (i32, i32) {
    %c0_i32 = arith.constant 0 : i32
    %c0_i32_0 = arith.constant 0 : i32
    %c0_i32_1 = arith.constant 0 : i32
    return %c0_i32, %c0_i32_0 : i32, i32
  }
  func.func @transform_6(%arg0: i32) -> (i32, i32) {
    %c0_i32 = arith.constant 0 : i32
    %c0_i32_0 = arith.constant 0 : i32
    %c0_i32_1 = arith.constant 0 : i32
    return %c0_i32, %c0_i32_0 : i32, i32
  }
  func.func @transform_7(%arg0: i32) -> (i32, i32) {
    %c0_i32 = arith.constant 0 : i32
    %c0_i32_0 = arith.constant 0 : i32
    return %arg0, %c0_i32 : i32, i32
  }
}

</mosaic_0001>

<llo_original>
// kernel: tpu_custom_call.1
$region0: #{tpu_custom_call.1}
  #allocation0 [shape = 'u32[]', space=smem, size = 0x4, offset = 0x4, fixed_abs, tag = 'smem constant byte address 0x4 - core index']
  #allocation1 [shape = 'u32[72,128]{1,0:T(1,128)}', space=vmem, size = 0x9000, scoped, tag = 'internal scratch']
  %s0 = inlined_call_operand.vmem [shape: bf16[64,16], index: 0, kind: input, shape index: {}]
  %s1 = inlined_call_operand.vmem [shape: bf16[16,128], index: 1, kind: input, shape index: {}]
  %s2 = inlined_call_operand.vmem [shape: f32[1,128], index: 2, kind: input, shape index: {}]
  %s3 = inlined_call_operand.hbm [shape: bf16[128,128], index: 3, kind: input, shape index: {}]
  %s4 = inlined_call_operand.vmem [shape: f32[1,128], index: 4, kind: input, shape index: {}]
  %s5 = inlined_call_operand.hbm [shape: bf16[128,128], index: 5, kind: input, shape index: {}]
  %s6 = inlined_call_operand.vmem [shape: f32[1,128], index: 6, kind: input, shape index: {}]
  %s7 = inlined_call_operand.hbm [shape: f32[64,128], index: 7, kind: output, shape index: {}]
  %s8 = sld [smem:[#allocation0]]
  $region69: #{tpu_custom_call.1} parent=0
    _
  %s10 = ssub.s32 1, %s8
  %s11 = scalar_select 0, %s10, %s8
  $region1: #{tpu_custom_call.1} parent=0
    #allocation2 [shape = 'u8[32768]{0}', space=vmem, size = 0x8000, scoped, tag = 'input window, operand 3, single buffered']
    #allocation3 [shape = 's32[2]{0}', space=sflag, size = 0x8, scoped, tag = 'scoped memory for tpu_custom_call.1']
    #allocation4 [shape = 's32[2]{0}', space=sflag, size = 0x8, scoped, tag = 'scoped memory for tpu_custom_call.1']
    #allocation5 [shape = 'u8[32768]{0}', space=vmem, size = 0x8000, scoped, tag = 'input window, operand 5, single buffered']
    #allocation6 [shape = 's32[1]{0}', space=sflag, size = 0x4, scoped, tag = 'scoped memory for tpu_custom_call.1']
    #allocation7 [shape = 'u8[32768]{0}', space=vmem, size = 0x8000, scoped, tag = 'output window, operand 0']
    %12 = vsyncpa [#allocation3], 0
    %13 = vsyncpa [#allocation6], 0
    %14 = vsyncpa [#allocation4], 0
    %s15 = scalar_lea.sflag [#allocation4], 1
    %16 = vsyncpa %s15, 0
    loop: start=0, step=1, limit=4
    $region2: #{tpu_custom_call.1} parent=1 // loop_pre_header
      _
    $region3: #{tpu_custom_call.1} parent=1 // loop_header
      %s18 = sphi 0, %s22
      %p19 = scmp.ge.s32.totalorder %s18, 4
      %s28 = sphi 0, %s30
      %s31 = sphi 0, %s28
      %s32 = sphi 0, %s31
      %s48 = sphi 0, %s32
      %s52 = sphi 0, %s52
      %s54 = sphi 0, %s52
      %s55 = sphi 0, %s54
      %s69 = sphi 0, %s55
      %s73 = sphi 0, %s73
      %s75 = sphi 0, %s73
      %s76 = sphi 0, %s75
      %s90 = sphi 0, %s76
      %s94 = sphi 0, %s94
      %s96 = sphi 0, %s94
      %s97 = sphi 0, %s96
      %s111 = sphi 0, %s97
      %s115 = sphi 0, %s115
      %s117 = sphi 0, %s115
      %s118 = sphi 0, %s117
      %s132 = sphi 0, %s118
      %s136 = sphi 0, %s136
      %s138 = sphi 0, %s136
      %s139 = sphi 0, %s138
      %s153 = sphi 0, %s139
      %s157 = sphi 0, %s157
      %s159 = sphi 0, %s157
      %s160 = sphi 0, %s159
      %s174 = sphi 0, %s160
      %s180 = sphi 0, %s182
      %s183 = sphi 0, %s180
      %s184 = sphi 0, %s183
      %s200 = sphi 0, %s184
    $region4: #{tpu_custom_call.1} parent=1 // loop_header_branch
      %21 = sbr.rel (%p19) target = $region8
    $region5: #{tpu_custom_call.1} parent=1 // loop_body
      %s23 = ssub.s32 %s18, 1
      %s24 = ssub.s32 %s18, 2
      %s25 = sadd.s32 %s18, 1
      %s26 = ssub.s32 %s18, %s25
      %p27 = scmp.eq.s32.totalorder %s26, 0
      %s29 = sadd.s32 %s28, 1
      %s30 = scalar_select %p27, %s28, %s29
      %p33 = pneg %p27
      %p34 = scmp.eq.s32.totalorder %s18, 1
      %p35 = por %p33, %p34
      %p36 = scmp.ne.s32.totalorder %s28, %s31
      %p37 = scmp.eq.s32.totalorder %s18, 0
      %p38 = por %p36, %p37
      %p39 = scmp.ne.s32.totalorder %s28, %s31
      %p40 = scmp.eq.s32.totalorder %s23, 1
      %p41 = por %p39, %p40
      %p42 = scmp.ne.s32.totalorder %s31, %s32
      %p43 = scmp.eq.s32.totalorder %s23, 0
      %p44 = por %p42, %p43
      %p45 = scmp.ne.s32.totalorder %s31, %s32
      %p46 = scmp.eq.s32.totalorder %s24, 1
      %p47 = por %p45, %p46
      %p49 = scmp.ne.s32.totalorder %s32, %s48
      %p50 = scmp.eq.s32.totalorder %s24, 0
      %p51 = por %p49, %p50
      %s53 = sadd.s32 %s52, 1
      %p56 = scmp.eq.s32.totalorder %s18, 1
      %p57 = scmp.ne.s32.totalorder %s52, %s54
      %p58 = scmp.eq.s32.totalorder %s18, 0
      %p59 = por %p57, %p58
      %p60 = scmp.ne.s32.totalorder %s52, %s54
      %p61 = scmp.eq.s32.totalorder %s23, 1
      %p62 = por %p60, %p61
      %p63 = scmp.ne.s32.totalorder %s54, %s55
      %p64 = scmp.eq.s32.totalorder %s23, 0
      %p65 = por %p63, %p64
      %p66 = scmp.ne.s32.totalorder %s54, %s55
      %p67 = scmp.eq.s32.totalorder %s24, 1
      %p68 = por %p66, %p67
      %p70 = scmp.ne.s32.totalorder %s55, %s69
      %p71 = scmp.eq.s32.totalorder %s24, 0
      %p72 = por %p70, %p71
      %s74 = sadd.s32 %s73, 1
      %p77 = scmp.eq.s32.totalorder %s18, 1
      %p78 = scmp.ne.s32.totalorder %s73, %s75
      %p79 = scmp.eq.s32.totalorder %s18, 0
      %p80 = por %p78, %p79
      %p81 = scmp.ne.s32.totalorder %s73, %s75
      %p82 = scmp.eq.s32.totalorder %s23, 1
      %p83 = por %p81, %p82
      %p84 = scmp.ne.s32.totalorder %s75, %s76
      %p85 = scmp.eq.s32.totalorder %s23, 0
      %p86 = por %p84, %p85
      %p87 = scmp.ne.s32.totalorder %s75, %s76
      %p88 = scmp.eq.s32.totalorder %s24, 1
      %p89 = por %p87, %p88
      %p91 = scmp.ne.s32.totalorder %s76, %s90
      %p92 = scmp.eq.s32.totalorder %s24, 0
      %p93 = por %p91, %p92
      %s95 = sadd.s32 %s94, 1
      %p98 = scmp.eq.s32.totalorder %s18, 1
      %p99 = scmp.ne.s32.totalorder %s94, %s96
      %p100 = scmp.eq.s32.totalorder %s18, 0
      %p101 = por %p99, %p100
      %p102 = scmp.ne.s32.totalorder %s94, %s96
      %p103 = scmp.eq.s32.totalorder %s23, 1
      %p104 = por %p102, %p103
      %p105 = scmp.ne.s32.totalorder %s96, %s97
      %p106 = scmp.eq.s32.totalorder %s23, 0
      %p107 = por %p105, %p106
      %p108 = scmp.ne.s32.totalorder %s96, %s97
      %p109 = scmp.eq.s32.totalorder %s24, 1
      %p110 = por %p108, %p109
      %p112 = scmp.ne.s32.totalorder %s97, %s111
      %p113 = scmp.eq.s32.totalorder %s24, 0
      %p114 = por %p112, %p113
      %s116 = sadd.s32 %s115, 1
      %p119 = scmp.eq.s32.totalorder %s18, 1
      %p120 = scmp.ne.s32.totalorder %s115, %s117
      %p121 = scmp.eq.s32.totalorder %s18, 0
      %p122 = por %p120, %p121
      %p123 = scmp.ne.s32.totalorder %s115, %s117
      %p124 = scmp.eq.s32.totalorder %s23, 1
      %p125 = por %p123, %p124
      %p126 = scmp.ne.s32.totalorder %s117, %s118
      %p127 = scmp.eq.s32.totalorder %s23, 0
      %p128 = por %p126, %p127
      %p129 = scmp.ne.s32.totalorder %s117, %s118
      %p130 = scmp.eq.s32.totalorder %s24, 1
      %p131 = por %p129, %p130
      %p133 = scmp.ne.s32.totalorder %s118, %s132
      %p134 = scmp.eq.s32.totalorder %s24, 0
      %p135 = por %p133, %p134
      %s137 = sadd.s32 %s136, 1
      %p140 = scmp.eq.s32.totalorder %s18, 1
      %p141 = scmp.ne.s32.totalorder %s136, %s138
      %p142 = scmp.eq.s32.totalorder %s18, 0
      %p143 = por %p141, %p142
      %p144 = scmp.ne.s32.totalorder %s136, %s138
      %p145 = scmp.eq.s32.totalorder %s23, 1
      %p146 = por %p144, %p145
      %p147 = scmp.ne.s32.totalorder %s138, %s139
      %p148 = scmp.eq.s32.totalorder %s23, 0
      %p149 = por %p147, %p148
      %p150 = scmp.ne.s32.totalorder %s138, %s139
      %p151 = scmp.eq.s32.totalorder %s24, 1
      %p152 = por %p150, %p151
      %p154 = scmp.ne.s32.totalorder %s139, %s153
      %p155 = scmp.eq.s32.totalorder %s24, 0
      %p156 = por %p154, %p155
      %s158 = sadd.s32 %s157, 1
      %p161 = scmp.eq.s32.totalorder %s18, 1
      %p162 = scmp.ne.s32.totalorder %s157, %s159
      %p163 = scmp.eq.s32.totalorder %s18, 0
      %p164 = por %p162, %p163
      %p165 = scmp.ne.s32.totalorder %s157, %s159
      %p166 = scmp.eq.s32.totalorder %s23, 1
      %p167 = por %p165, %p166
      %p168 = scmp.ne.s32.totalorder %s159, %s160
      %p169 = scmp.eq.s32.totalorder %s23, 0
      %p170 = por %p168, %p169
      %p171 = scmp.ne.s32.totalorder %s159, %s160
      %p172 = scmp.eq.s32.totalorder %s24, 1
      %p173 = por %p171, %p172
      %p175 = scmp.ne.s32.totalorder %s160, %s174
      %p176 = scmp.eq.s32.totalorder %s24, 0
      %p177 = por %p175, %p176
      %s178 = ssub.s32 %s18, %s25
      %p179 = scmp.eq.s32.totalorder %s178, 0
      %s181 = sadd.s32 %s180, 1
      %s182 = scalar_select %p179, %s180, %s181
      %p185 = pneg %p179
      %p186 = scmp.eq.s32.totalorder %s18, 1
      %p187 = por %p185, %p186
      %p188 = scmp.ne.s32.totalorder %s180, %s183
      %p189 = scmp.eq.s32.totalorder %s18, 0
      %p190 = por %p188, %p189
      %p191 = scmp.ne.s32.totalorder %s180, %s183
      %p192 = scmp.eq.s32.totalorder %s23, 1
      %p193 = por %p191, %p192
      %p194 = scmp.ne.s32.totalorder %s183, %s184
      %p195 = scmp.eq.s32.totalorder %s23, 0
      %p196 = por %p194, %p195
      %p197 = scmp.ne.s32.totalorder %s183, %s184
      %p198 = scmp.eq.s32.totalorder %s24, 1
      %p199 = por %p197, %p198
      %p201 = scmp.ne.s32.totalorder %s184, %s200
      %p202 = scmp.eq.s32.totalorder %s24, 0
      %p203 = por %p201, %p202
      %p204 = scmp.le.s32.totalorder 1, %s18
      %p205 = scmp.lt.s32.totalorder %s18, 3
      %p206 = pnand %p204, %p205
      %p207 = pneg %p206
      // Predicated region
      $region9: #{tpu_custom_call.1} parent=5 // pred_check
        _
      $region10: #{tpu_custom_call.1} parent=5 // pred_check_branch
        %209 = sbr.rel (%p206) target = $region12
      $region11: #{tpu_custom_call.1} parent=5 // pred_region
        %s210 = ssub.s32 %s18, 1
        // Predicated region
        $region13: #{tpu_custom_call.1} parent=11 // pred_check
          %p211 = pneg %p65
        $region14: #{tpu_custom_call.1} parent=11 // pred_check_branch
          %213 = sbr.rel (%p211) target = $region16
        $region15: #{tpu_custom_call.1} parent=11 // pred_region
          _
        $region16: #{tpu_custom_call.1} parent=11 // pred_fallthru
          _
        // Predicated region
        $region17: #{tpu_custom_call.1} parent=11 // pred_check
          %p214 = pneg %p86
        $region18: #{tpu_custom_call.1} parent=11 // pred_check_branch
          %216 = sbr.rel (%p214) target = $region20
        $region19: #{tpu_custom_call.1} parent=11 // pred_region
          _
        $region20: #{tpu_custom_call.1} parent=11 // pred_fallthru
          _
        // Predicated region
        $region21: #{tpu_custom_call.1} parent=11 // pred_check
          %p217 = pneg %p107
        $region22: #{tpu_custom_call.1} parent=11 // pred_check_branch
          %219 = sbr.rel (%p217) target = $region24
        $region23: #{tpu_custom_call.1} parent=11 // pred_region
          %221 = vsyncadd [#allocation3], 0
          %s222 = sshll.u32 %s3, 4
          %s223 = int_to_ptr.hbm [resolvable:$true] %s222
          %s224 = sshll.u32 [#allocation2], 4
          %s225 = int_to_ptr.vmem [resolvable:$true] %s224
          %230 = dma.hbm_to_vmem [thread:$0]  %s223, 1024, %s225, [#allocation3], 64, 64, 4
        $region24: #{tpu_custom_call.1} parent=11 // pred_fallthru
          _
        // Predicated region
        $region25: #{tpu_custom_call.1} parent=11 // pred_check
          %p231 = pneg %p128
        $region26: #{tpu_custom_call.1} parent=11 // pred_check_branch
          %233 = sbr.rel (%p231) target = $region28
        $region27: #{tpu_custom_call.1} parent=11 // pred_region
          _
        $region28: #{tpu_custom_call.1} parent=11 // pred_fallthru
          _
        // Predicated region
        $region29: #{tpu_custom_call.1} parent=11 // pred_check
          %p234 = pneg %p149
        $region30: #{tpu_custom_call.1} parent=11 // pred_check_branch
          %236 = sbr.rel (%p234) target = $region32
        $region31: #{tpu_custom_call.1} parent=11 // pred_region
          %238 = vsyncadd [#allocation6], 0
          %s239 = sshll.u32 %s5, 4
          %s240 = int_to_ptr.hbm [resolvable:$true] %s239
          %s241 = sshll.u32 [#allocation5], 4
          %s242 = int_to_ptr.vmem [resolvable:$true] %s241
          %247 = dma.hbm_to_vmem [thread:$0]  %s240, 1024, %s242, [#allocation6], 64, 64, 4
        $region32: #{tpu_custom_call.1} parent=11 // pred_fallthru
          _
        // Predicated region
        $region33: #{tpu_custom_call.1} parent=11 // pred_check
          %p248 = pneg %p170
        $region34: #{tpu_custom_call.1} parent=11 // pred_check_branch
          %250 = sbr.rel (%p248) target = $region36
        $region35: #{tpu_custom_call.1} parent=11 // pred_region
          _
        $region36: #{tpu_custom_call.1} parent=11 // pred_fallthru
          _
      $region12: #{tpu_custom_call.1} parent=5 // pred_fallthru
        _
      %p251 = scmp.lt.s32.totalorder %s18, 2
      // Predicated region
      $region37: #{tpu_custom_call.1} parent=5 // pred_check
        %p252 = pneg %p251
      $region38: #{tpu_custom_call.1} parent=5 // pred_check_branch
        %254 = sbr.rel (%p252) target = $region40
      $region39: #{tpu_custom_call.1} parent=5 // pred_region
        // Predicated region
        $region41: #{tpu_custom_call.1} parent=39 // pred_check
          %p255 = pneg %p38
        $region42: #{tpu_custom_call.1} parent=39 // pred_check_branch
          %257 = sbr.rel (%p255) target = $region44
        $region43: #{tpu_custom_call.1} parent=39 // pred_region
          %s258 = smul.u32 4, %s18
          %p259 = scmp.lt.s32.totalorder %s258, 7
          %s260 = scalar_select %p259, %s258, 7
          %s261 = smul.addr %s260, 4
          %s262 = scalar_lea.vmem %s0, %s261
          %s263 = smul.u32 4, %s18
        $region44: #{tpu_custom_call.1} parent=39 // pred_fallthru
          _
      $region40: #{tpu_custom_call.1} parent=5 // pred_fallthru
        _
      %p264 = scmp.le.s32.totalorder 1, %s18
      %p265 = scmp.lt.s32.totalorder %s18, 3
      %p266 = pnand %p264, %p265
      %p267 = pneg %p266
      // Predicated region
      $region45: #{tpu_custom_call.1} parent=5 // pred_check
        _
      $region46: #{tpu_custom_call.1} parent=5 // pred_check_branch
        %269 = sbr.rel (%p266) target = $region48
      $region47: #{tpu_custom_call.1} parent=5 // pred_region
        %s270 = ssub.s32 %s18, 1
        // Predicated region
        $region49: #{tpu_custom_call.1} parent=47 // pred_check
          %p271 = pneg %p107
        $region50: #{tpu_custom_call.1} parent=47 // pred_check_branch
          %273 = sbr.rel (%p271) target = $region52
        $region51: #{tpu_custom_call.1} parent=47 // pred_region
          %275 = dma.done [#allocation3], 1024
        $region52: #{tpu_custom_call.1} parent=47 // pred_fallthru
          _
        // Predicated region
        $region53: #{tpu_custom_call.1} parent=47 // pred_check
          %p276 = pneg %p149
        $region54: #{tpu_custom_call.1} parent=47 // pred_check_branch
          %278 = sbr.rel (%p276) target = $region56
        $region55: #{tpu_custom_call.1} parent=47 // pred_region
          %280 = dma.done [#allocation6], 1024
        $region56: #{tpu_custom_call.1} parent=47 // pred_fallthru
          _
        %s281 = smul.u32 4, %s23
        %p282 = scmp.lt.s32.totalorder %s281, 7
        %s283 = scalar_select %p282, %s281, 7
        %s284 = smul.addr %s283, 4
        %s285 = scalar_lea.vmem %s0, %s284
        %p286 = pneg %p44
        %p287 = pneg %p41
        %p288 = pneg %p65
        %p289 = pneg %p62
        %p290 = pneg %p86
        %p291 = pneg %p83
        %p292 = pneg %p107
        %p293 = pneg %p104
        %p294 = pneg %p128
        %p295 = pneg %p125
        %p296 = pneg %p149
        %p297 = pneg %p146
        %p298 = pneg %p170
        %p299 = pneg %p167
        %p300 = pneg %p196
        %p301 = pneg %p193
        %s302 = sand.u32 %s183, 1
        %s303 = scalar_lea.sflag [#allocation4], %s302
        %s304 = sand.u32 %s183, 1
        %s305 = smul.addr %s304, 32
        %s306 = scalar_lea.vmem [#allocation7], %s305
        %s307 = smul.u32 4, %s23
        %p308 = scmp.lt.s32.totalorder %s307, 7
        %s309 = scalar_select %p308, %s307, 7
        %s310 = smul.addr %s309, 4
        %s311 = scalar_lea.vmem %s0, %s310
        %s312 = smul.u32 4, %s23
        %s313 = smul.u32 4, %s23
        %v315 = vld [vmem:[%s311] sm:$0xf]
        %v316 = vld [vmem:[%s311 + $0x4] sm:$0xf]
        %v317 = vld [vmem:[%s311 + $0x8] sm:$0xf]
        %v318 = vld [vmem:[%s311 + $0xc] sm:$0xf]
        %v319 = vld [vmem:[%s1] sm:$0xf]
        %v320 = vld [vmem:[%s1 + $0x4] sm:$0xf]
        %v321 = vld [vmem:[%s2] sm:$0x1]
        %v323 = vperm.slane %v321, 0
        %v329 = vunpack.c.l.b16 %v315
        %v330 = vunpack.c.l.b16 %v316
        %v331 = vunpack.c.l.b16 %v317
        %v332 = vunpack.c.l.b16 %v318
        %v333 = vpack.c.b16 %v330, %v329
        %v334 = vpack.c.b16 %v332, %v331
        %v337 = vunpack.c.l.b16 %v319
        %v338 = vunpack.c.l.b16 %v320
        %v339 = vpack.c.b16 %v338, %v337
        %vm341 = vcmask 130048
        %v343 = vsel %vm341, %v333, 0
        %v346 = vsel %vm341, %v334, 0
        %348 = vmatpush.bf16.msra.mxu0 0
        %349 = vmatpush.bf16.msra.mxu0 0
        %350 = vmatpush.bf16.msra.mxu0 0
        %351 = vmatpush.bf16.msra.mxu0 0
        %352 = vmatpush.bf16.msra.mxu0 0
        %353 = vmatpush.bf16.msra.mxu0 0
        %354 = vmatpush.bf16.msra.mxu0 0
        %355 = vmatpush.bf16.msra.mxu0 %v339
        %356 = vmatmul.bf16.gmra.mxu0 %v343
        %v357 = vpop.f32.mrf.mxu0
        %v358 = vadd.f32 %v323, %v357
        %v359 = vpop.f32.mrf.mxu0
        %v360 = vadd.f32 %v323, %v359
        %361 = vmatmul.bf16.gmra.mxu0 %v346
        %v362 = vpop.f32.mrf.mxu0
        %v363 = vadd.f32 %v323, %v362
        %v364 = vpop.f32.mrf.mxu0
        %v365 = vadd.f32 %v323, %v364
        %366 = vdwg.mxu0
        %v367 = vmax.f32 %v358, 0.0
        %v368 = vmax.f32 %v360, 0.0
        %v369 = vmax.f32 %v363, 0.0
        %v370 = vmax.f32 %v365, 0.0
        %v371 = vpack.c.bf16 %v368, %v367
        %v372 = vpack.c.bf16 %v370, %v369
        %v373 = vld [vmem:[#allocation2] sm:$0xf]
        %v374 = vld [vmem:[#allocation2 + $0x4] sm:$0xf]
        %v375 = vld [vmem:[#allocation2 + $0x8] sm:$0xf]
        %v376 = vld [vmem:[#allocation2 + $0xc] sm:$0xf]
        %v377 = vld [vmem:[#allocation2 + $0x10] sm:$0xf]
        %v378 = vld [vmem:[#allocation2 + $0x14] sm:$0xf]
        %v379 = vld [vmem:[#allocation2 + $0x18] sm:$0xf]
        %v380 = vld [vmem:[#allocation2 + $0x1c] sm:$0xf]
        %v381 = vld [vmem:[#allocation2 + $0x20] sm:$0xf]
        %v382 = vld [vmem:[#allocation2 + $0x24] sm:$0xf]
        %v383 = vld [vmem:[#allocation2 + $0x28] sm:$0xf]
        %v384 = vld [vmem:[#allocation2 + $0x2c] sm:$0xf]
        %v385 = vld [vmem:[#allocation2 + $0x30] sm:$0xf]
        %v386 = vld [vmem:[#allocation2 + $0x34] sm:$0xf]
        %v387 = vld [vmem:[#allocation2 + $0x38] sm:$0xf]
        %v388 = vld [vmem:[#allocation2 + $0x3c] sm:$0xf]
        %v389 = vld [vmem:[%s4] sm:$0x1]
        %v391 = vperm.slane %v389, 0
        %v409 = vunpack.c.l.b16 %v373
        %v410 = vunpack.c.l.b16 %v374
        %v411 = vunpack.c.l.b16 %v375
        %v412 = vunpack.c.l.b16 %v376
        %v413 = vunpack.c.l.b16 %v377
        %v414 = vunpack.c.l.b16 %v378
        %v415 = vunpack.c.l.b16 %v379
        %v416 = vunpack.c.l.b16 %v380
        %v417 = vunpack.c.l.b16 %v381
        %v418 = vunpack.c.l.b16 %v382
        %v419 = vunpack.c.l.b16 %v383
        %v420 = vunpack.c.l.b16 %v384
        %v421 = vunpack.c.l.b16 %v385
        %v422 = vunpack.c.l.b16 %v386
        %v423 = vunpack.c.l.b16 %v387
        %v424 = vunpack.c.l.b16 %v388
        %v425 = vpack.c.b16 %v410, %v409
        %v426 = vpack.c.b16 %v412, %v411
        %v427 = vpack.c.b16 %v414, %v413
        %v428 = vpack.c.b16 %v416, %v415
        %v429 = vpack.c.b16 %v418, %v417
        %v430 = vpack.c.b16 %v420, %v419
        %v431 = vpack.c.b16 %v422, %v421
        %v432 = vpack.c.b16 %v424, %v423
        %441 = vmatpush.bf16.msra.mxu0 %v432
        %442 = vmatpush.bf16.msra.mxu0 %v431
        %443 = vmatpush.bf16.msra.mxu0 %v430
        %444 = vmatpush.bf16.msra.mxu0 %v429
        %445 = vmatpush.bf16.msra.mxu0 %v428
        %446 = vmatpush.bf16.msra.mxu0 %v427
        %447 = vmatpush.bf16.msra.mxu0 %v426
        %448 = vmatpush.bf16.msra.mxu0 %v425
        %449 = vmatmul.bf16.gmra.mxu0 %v371
        %v450 = vpop.f32.mrf.mxu0
        %v451 = vadd.f32 %v391, %v450
        %v452 = vpop.f32.mrf.mxu0
        %v453 = vadd.f32 %v391, %v452
        %454 = vmatmul.bf16.gmra.mxu0 %v372
        %v455 = vpop.f32.mrf.mxu0
        %v456 = vadd.f32 %v391, %v455
        %v457 = vpop.f32.mrf.mxu0
        %v458 = vadd.f32 %v391, %v457
        %459 = vdwg.mxu0
        %v460 = vmax.f32 %v451, 0.0
        %v461 = vmax.f32 %v453, 0.0
        %v462 = vmax.f32 %v456, 0.0
        %v463 = vmax.f32 %v458, 0.0
        %v464 = vpack.c.bf16 %v461, %v460
        %v465 = vpack.c.bf16 %v463, %v462
        %v466 = vld [vmem:[#allocation5] sm:$0xf]
        %v467 = vld [vmem:[#allocation5 + $0x4] sm:$0xf]
        %v468 = vld [vmem:[#allocation5 + $0x8] sm:$0xf]
        %v469 = vld [vmem:[#allocation5 + $0xc] sm:$0xf]
        %v470 = vld [vmem:[#allocation5 + $0x10] sm:$0xf]
        %v471 = vld [vmem:[#allocation5 + $0x14] sm:$0xf]
        %v472 = vld [vmem:[#allocation5 + $0x18] sm:$0xf]
        %v473 = vld [vmem:[#allocation5 + $0x1c] sm:$0xf]
        %v474 = vld [vmem:[#allocation5 + $0x20] sm:$0xf]
        %v475 = vld [vmem:[#allocation5 + $0x24] sm:$0xf]
        %v476 = vld [vmem:[#allocation5 + $0x28] sm:$0xf]
        %v477 = vld [vmem:[#allocation5 + $0x2c] sm:$0xf]
        %v478 = vld [vmem:[#allocation5 + $0x30] sm:$0xf]
        %v479 = vld [vmem:[#allocation5 + $0x34] sm:$0xf]
        %v480 = vld [vmem:[#allocation5 + $0x38] sm:$0xf]
        %v481 = vld [vmem:[#allocation5 + $0x3c] sm:$0xf]
        %v482 = vld [vmem:[%s6] sm:$0x1]
        %v484 = vperm.slane %v482, 0
        %v502 = vunpack.c.l.b16 %v466
        %v503 = vunpack.c.l.b16 %v467
        %v504 = vunpack.c.l.b16 %v468
        %v505 = vunpack.c.l.b16 %v469
        %v506 = vunpack.c.l.b16 %v470
        %v507 = vunpack.c.l.b16 %v471
        %v508 = vunpack.c.l.b16 %v472
        %v509 = vunpack.c.l.b16 %v473
        %v510 = vunpack.c.l.b16 %v474
        %v511 = vunpack.c.l.b16 %v475
        %v512 = vunpack.c.l.b16 %v476
        %v513 = vunpack.c.l.b16 %v477
        %v514 = vunpack.c.l.b16 %v478
        %v515 = vunpack.c.l.b16 %v479
        %v516 = vunpack.c.l.b16 %v480
        %v517 = vunpack.c.l.b16 %v481
        %v518 = vpack.c.b16 %v503, %v502
        %v519 = vpack.c.b16 %v505, %v504
        %v520 = vpack.c.b16 %v507, %v506
        %v521 = vpack.c.b16 %v509, %v508
        %v522 = vpack.c.b16 %v511, %v510
        %v523 = vpack.c.b16 %v513, %v512
        %v524 = vpack.c.b16 %v515, %v514
        %v525 = vpack.c.b16 %v517, %v516
        %534 = vmatpush.bf16.msra.mxu0 %v525
        %535 = vmatpush.bf16.msra.mxu0 %v524
        %536 = vmatpush.bf16.msra.mxu0 %v523
        %537 = vmatpush.bf16.msra.mxu0 %v522
        %538 = vmatpush.bf16.msra.mxu0 %v521
        %539 = vmatpush.bf16.msra.mxu0 %v520
        %540 = vmatpush.bf16.msra.mxu0 %v519
        %541 = vmatpush.bf16.msra.mxu0 %v518
        %542 = vmatmul.bf16.gmra.mxu0 %v464
        %v543 = vpop.f32.mrf.mxu0
        %v544 = vadd.f32 %v484, %v543
        %v545 = vpop.f32.mrf.mxu0
        %v546 = vadd.f32 %v484, %v545
        %547 = vmatmul.bf16.gmra.mxu0 %v465
        %v548 = vpop.f32.mrf.mxu0
        %v549 = vadd.f32 %v484, %v548
        %v550 = vpop.f32.mrf.mxu0
        %v551 = vadd.f32 %v484, %v550
        %552 = vdwg.mxu0
        %553 = vmax.xlane.f32.xlu0 %v544
        %v554 = vpop.xlane.xlu0 %553
        %555 = vmax.xlane.f32.xlu0 %v546
        %v556 = vpop.xlane.xlu0 %555
        %557 = vmax.xlane.f32.xlu0 %v549
        %v558 = vpop.xlane.xlu0 %557
        %559 = vmax.xlane.f32.xlu0 %v551
        %v560 = vpop.xlane.xlu0 %559
        %v561 = vsub.f32 %v544, %v554
        %v562 = vsub.f32 %v546, %v556
        %v563 = vsub.f32 %v549, %v558
        %v564 = vsub.f32 %v551, %v560
        %v565 = vmul.f32 %v561, 1.442695
        %v566 = vpow.pop %v565
        %v567 = vmul.f32 %v562, 1.442695
        %v568 = vpow.pop %v567
        %v569 = vmul.f32 %v563, 1.442695
        %v570 = vpow.pop %v569
        %v571 = vmul.f32 %v564, 1.442695
        %v572 = vpow.pop %v571
        %573 = vadd.xlane.f32.xlu0 %v566
        %v574 = vpop.xlane.xlu0 %573
        %575 = vadd.xlane.f32.xlu0 %v568
        %v576 = vpop.xlane.xlu0 %575
        %577 = vadd.xlane.f32.xlu0 %v570
        %v578 = vpop.xlane.xlu0 %577
        %579 = vadd.xlane.f32.xlu0 %v572
        %v580 = vpop.xlane.xlu0 %579
        %v581 = vrcp.pop %v574
        %v582 = vrcp.pop %v576
        %v583 = vrcp.pop %v578
        %v584 = vrcp.pop %v580
        %v585 = vmul.f32 %v566, %v581
        %v586 = vmul.f32 %v568, %v582
        %v587 = vmul.f32 %v570, %v583
        %v588 = vmul.f32 %v572, %v584
        %589 = vst [vmem:[%s306] sm:$0xff] %v585
        %590 = vst [vmem:[%s306 + $0x8] sm:$0xff] %v586
        %591 = vst [vmem:[%s306 + $0x10] sm:$0xff] %v587
        %592 = vst [vmem:[%s306 + $0x18] sm:$0xff] %v588
        %s593 = sand.u32 %s183, 1
        %s594 = scalar_lea.sflag [#allocation4], %s593
        %s595 = sand.u32 %s183, 1
        %s596 = smul.addr %s595, 32
        %s597 = scalar_lea.vmem [#allocation7], %s596
        // Predicated region
        $region57: #{tpu_custom_call.1} parent=47 // pred_check
          %p598 = pneg %p193
        $region58: #{tpu_custom_call.1} parent=47 // pred_check_branch
          %600 = sbr.rel (%p598) target = $region60
        $region59: #{tpu_custom_call.1} parent=47 // pred_region
          %s601 = smul.u32 4, %s23
          %603 = vsyncadd %s594, 0
          %s604 = smul.addr %s601, 8
          %s605 = scalar_lea.hbm %s7, %s604
          %s606 = sshll.u32 %s597, 4
          %s607 = int_to_ptr.vmem [resolvable:$true] %s606
          %s608 = sshll.u32 %s605, 4
          %s609 = int_to_ptr.hbm [resolvable:$true] %s608
          %614 = dma.vmem_to_hbm [thread:$0]  %s607, 512, %s609, %s594, 128, 128, 8
        $region60: #{tpu_custom_call.1} parent=47 // pred_fallthru
          _
      $region48: #{tpu_custom_call.1} parent=5 // pred_fallthru
        _
      %p615 = scmp.le.s32.totalorder 2, %s18
      // Predicated region
      $region61: #{tpu_custom_call.1} parent=5 // pred_check
        %p616 = pneg %p615
      $region62: #{tpu_custom_call.1} parent=5 // pred_check_branch
        %618 = sbr.rel (%p616) target = $region64
      $region63: #{tpu_custom_call.1} parent=5 // pred_region
        %s619 = ssub.s32 %s18, 2
        // Predicated region
        $region65: #{tpu_custom_call.1} parent=63 // pred_check
          %p620 = pneg %p199
        $region66: #{tpu_custom_call.1} parent=63 // pred_check_branch
          %622 = sbr.rel (%p620) target = $region68
        $region67: #{tpu_custom_call.1} parent=63 // pred_region
          %s623 = sand.u32 %s184, 1
          %s624 = scalar_lea.sflag [#allocation4], %s623
          %s625 = sand.u32 %s184, 1
          %s626 = smul.addr %s625, 32
          %s627 = scalar_lea.vmem [#allocation7], %s626
          %629 = dma.done %s624, 512
        $region68: #{tpu_custom_call.1} parent=63 // pred_fallthru
          _
      $region64: #{tpu_custom_call.1} parent=5 // pred_fallthru
        _
    $region6: #{tpu_custom_call.1} parent=1 // loop_footer
      %s22 = sadd.s32 1, %s18
    $region7: #{tpu_custom_call.1} parent=1 // loop_footer_branch
      %17 = sbr.rel target = $region3
    $region8: #{tpu_custom_call.1} parent=1 // loop_exit
      _
    %630 = vsyncpa [#allocation3], 1
    %s631 = scalar_lea.sflag [#allocation3], 1
    %632 = vsyncpa %s631, 1
    %633 = vsyncpa [#allocation6], 1
    %634 = vsyncpa [#allocation4], 1
    %s635 = scalar_lea.sflag [#allocation4], 1
    %636 = vsyncpa %s635, 1

// kernel: tpu_custom_call.1
$region0: #{tpu_custom_call.1}
  #allocation0 [shape = 'u32[]', space=smem, size = 0x4, offset = 0x4, fixed_abs, tag = 'smem constant byte address 0x4 - core index']
  #allocation1 [shape = 'u32[72,128]{1,0:T(1,128)}', space=vmem, size = 0x9000, scoped, tag = 'internal scratch']
  %s0 = inlined_call_operand.vmem [shape: bf16[64,16], index: 0, kind: input, shape index: {}]
  %s1 = inlined_call_operand.vmem [shape: bf16[16,128], index: 1, kind: input, shape index: {}]
  %s2 = inlined_call_operand.vmem [shape: f32[1,128], index: 2, kind: input, shape index: {}]
  %s3 = inlined_call_operand.hbm [shape: bf16[128,128], index: 3, kind: input, shape index: {}]
  %s4 = inlined_call_operand.vmem [shape: f32[1,128], index: 4, kind: input, shape index: {}]
  %s5 = inlined_call_operand.hbm [shape: bf16[128,128], index: 5, kind: input, shape index: {}]
  %s6 = inlined_call_operand.vmem [shape: f32[1,128], index: 6, kind: input, shape index: {}]
  %s7 = inlined_call_operand.hbm [shape: f32[64,128], index: 7, kind: output, shape index: {}]
  %s8 = sld [smem:[#allocation0]]
  $region69: #{tpu_custom_call.1} parent=0
    _
  %s10 = ssub.s32 1, %s8
  %s11 = scalar_select 0, %s10, %s8
  $region1: #{tpu_custom_call.1} parent=0
    #allocation2 [shape = 'u8[32768]{0}', space=vmem, size = 0x8000, scoped, tag = 'input window, operand 3, single buffered']
    #allocation3 [shape = 's32[2]{0}', space=sflag, size = 0x8, scoped, tag = 'scoped memory for tpu_custom_call.1']
    #allocation4 [shape = 's32[2]{0}', space=sflag, size = 0x8, scoped, tag = 'scoped memory for tpu_custom_call.1']
    #allocation5 [shape = 'u8[32768]{0}', space=vmem, size = 0x8000, scoped, tag = 'input window, operand 5, single buffered']
    #allocation6 [shape = 's32[1]{0}', space=sflag, size = 0x4, scoped, tag = 'scoped memory for tpu_custom_call.1']
    #allocation7 [shape = 'u8[32768]{0}', space=vmem, size = 0x8000, scoped, tag = 'output window, operand 0']
    %12 = vsyncpa [#allocation3], 0
    %13 = vsyncpa [#allocation6], 0
    %14 = vsyncpa [#allocation4], 0
    %s15 = scalar_lea.sflag [#allocation4], 1
    %16 = vsyncpa %s15, 0
    loop: start=0, step=1, limit=4
    $region2: #{tpu_custom_call.1} parent=1 // loop_pre_header
      _
    $region3: #{tpu_custom_call.1} parent=1 // loop_header
      %s18 = sphi 0, %s22
      %p19 = scmp.ge.s32.totalorder %s18, 4
      %s28 = sphi 0, %s30
      %s31 = sphi 0, %s28
      %s32 = sphi 0, %s31
      %s48 = sphi 0, %s32
      %s52 = sphi 0, %s52
      %s54 = sphi 0, %s52
      %s55 = sphi 0, %s54
      %s69 = sphi 0, %s55
      %s73 = sphi 0, %s73
      %s75 = sphi 0, %s73
      %s76 = sphi 0, %s75
      %s90 = sphi 0, %s76
      %s94 = sphi 0, %s94
      %s96 = sphi 0, %s94
      %s97 = sphi 0, %s96
      %s111 = sphi 0, %s97
      %s115 = sphi 0, %s115
      %s117 = sphi 0, %s115
      %s118 = sphi 0, %s117
      %s132 = sphi 0, %s118
      %s136 = sphi 0, %s136
      %s138 = sphi 0, %s136
      %s139 = sphi 0, %s138
      %s153 = sphi 0, %s139
      %s157 = sphi 0, %s157
      %s159 = sphi 0, %s157
      %s160 = sphi 0, %s159
      %s174 = sphi 0, %s160
      %s180 = sphi 0, %s182
      %s183 = sphi 0, %s180
      %s184 = sphi 0, %s183
      %s200 = sphi 0, %s184
    $region4: #{tpu_custom_call.1} parent=1 // loop_header_branch
      %21 = sbr.rel (%p19) target = $region8
    $region5: #{tpu_custom_call.1} parent=1 // loop_body
      %s23 = ssub.s32 %s18, 1
      %s24 = ssub.s32 %s18, 2
      %s25 = sadd.s32 %s18, 1
      %s26 = ssub.s32 %s18, %s25
      %p27 = scmp.eq.s32.totalorder %s26, 0
      %s29 = sadd.s32 %s28, 1
      %s30 = scalar_select %p27, %s28, %s29
      %p33 = pneg %p27
      %p34 = scmp.eq.s32.totalorder %s18, 1
      %p35 = por %p33, %p34
      %p36 = scmp.ne.s32.totalorder %s28, %s31
      %p37 = scmp.eq.s32.totalorder %s18, 0
      %p38 = por %p36, %p37
      %p39 = scmp.ne.s32.totalorder %s28, %s31
      %p40 = scmp.eq.s32.totalorder %s23, 1
      %p41 = por %p39, %p40
      %p42 = scmp.ne.s32.totalorder %s31, %s32
      %p43 = scmp.eq.s32.totalorder %s23, 0
      %p44 = por %p42, %p43
      %p45 = scmp.ne.s32.totalorder %s31, %s32
      %p46 = scmp.eq.s32.totalorder %s24, 1
      %p47 = por %p45, %p46
      %p49 = scmp.ne.s32.totalorder %s32, %s48
      %p50 = scmp.eq.s32.totalorder %s24, 0
      %p51 = por %p49, %p50
      %s53 = sadd.s32 %s52, 1
      %p56 = scmp.eq.s32.totalorder %s18, 1
      %p57 = scmp.ne.s32.totalorder %s52, %s54
      %p58 = scmp.eq.s32.totalorder %s18, 0
      %p59 = por %p57, %p58
      %p60 = scmp.ne.s32.totalorder %s52, %s54
      %p61 = scmp.eq.s32.totalorder %s23, 1
      %p62 = por %p60, %p61
      %p63 = scmp.ne.s32.totalorder %s54, %s55
      %p64 = scmp.eq.s32.totalorder %s23, 0
      %p65 = por %p63, %p64
      %p66 = scmp.ne.s32.totalorder %s54, %s55
      %p67 = scmp.eq.s32.totalorder %s24, 1
      %p68 = por %p66, %p67
      %p70 = scmp.ne.s32.totalorder %s55, %s69
      %p71 = scmp.eq.s32.totalorder %s24, 0
      %p72 = por %p70, %p71
      %s74 = sadd.s32 %s73, 1
      %p77 = scmp.eq.s32.totalorder %s18, 1
      %p78 = scmp.ne.s32.totalorder %s73, %s75
      %p79 = scmp.eq.s32.totalorder %s18, 0
      %p80 = por %p78, %p79
      %p81 = scmp.ne.s32.totalorder %s73, %s75
      %p82 = scmp.eq.s32.totalorder %s23, 1
      %p83 = por %p81, %p82
      %p84 = scmp.ne.s32.totalorder %s75, %s76
      %p85 = scmp.eq.s32.totalorder %s23, 0
      %p86 = por %p84, %p85
      %p87 = scmp.ne.s32.totalorder %s75, %s76
      %p88 = scmp.eq.s32.totalorder %s24, 1
      %p89 = por %p87, %p88
      %p91 = scmp.ne.s32.totalorder %s76, %s90
      %p92 = scmp.eq.s32.totalorder %s24, 0
      %p93 = por %p91, %p92
      %s95 = sadd.s32 %s94, 1
      %p98 = scmp.eq.s32.totalorder %s18, 1
      %p99 = scmp.ne.s32.totalorder %s94, %s96
      %p100 = scmp.eq.s32.totalorder %s18, 0
      %p101 = por %p99, %p100
      %p102 = scmp.ne.s32.totalorder %s94, %s96
      %p103 = scmp.eq.s32.totalorder %s23, 1
      %p104 = por %p102, %p103
      %p105 = scmp.ne.s32.totalorder %s96, %s97
      %p106 = scmp.eq.s32.totalorder %s23, 0
      %p107 = por %p105, %p106
      %p108 = scmp.ne.s32.totalorder %s96, %s97
      %p109 = scmp.eq.s32.totalorder %s24, 1
      %p110 = por %p108, %p109
      %p112 = scmp.ne.s32.totalorder %s97, %s111
      %p113 = scmp.eq.s32.totalorder %s24, 0
      %p114 = por %p112, %p113
      %s116 = sadd.s32 %s115, 1
      %p119 = scmp.eq.s32.totalorder %s18, 1
      %p120 = scmp.ne.s32.totalorder %s115, %s117
      %p121 = scmp.eq.s32.totalorder %s18, 0
      %p122 = por %p120, %p121
      %p123 = scmp.ne.s32.totalorder %s115, %s117
      %p124 = scmp.eq.s32.totalorder %s23, 1
      %p125 = por %p123, %p124
      %p126 = scmp.ne.s32.totalorder %s117, %s118
      %p127 = scmp.eq.s32.totalorder %s23, 0
      %p128 = por %p126, %p127
      %p129 = scmp.ne.s32.totalorder %s117, %s118
      %p130 = scmp.eq.s32.totalorder %s24, 1
      %p131 = por %p129, %p130
      %p133 = scmp.ne.s32.totalorder %s118, %s132
      %p134 = scmp.eq.s32.totalorder %s24, 0
      %p135 = por %p133, %p134
      %s137 = sadd.s32 %s136, 1
      %p140 = scmp.eq.s32.totalorder %s18, 1
      %p141 = scmp.ne.s32.totalorder %s136, %s138
      %p142 = scmp.eq.s32.totalorder %s18, 0
      %p143 = por %p141, %p142
      %p144 = scmp.ne.s32.totalorder %s136, %s138
      %p145 = scmp.eq.s32.totalorder %s23, 1
      %p146 = por %p144, %p145
      %p147 = scmp.ne.s32.totalorder %s138, %s139
      %p148 = scmp.eq.s32.totalorder %s23, 0
      %p149 = por %p147, %p148
      %p150 = scmp.ne.s32.totalorder %s138, %s139
      %p151 = scmp.eq.s32.totalorder %s24, 1
      %p152 = por %p150, %p151
      %p154 = scmp.ne.s32.totalorder %s139, %s153
      %p155 = scmp.eq.s32.totalorder %s24, 0
      %p156 = por %p154, %p155
      %s158 = sadd.s32 %s157, 1
      %p161 = scmp.eq.s32.totalorder %s18, 1
      %p162 = scmp.ne.s32.totalorder %s157, %s159
      %p163 = scmp.eq.s32.totalorder %s18, 0
      %p164 = por %p162, %p163
      %p165 = scmp.ne.s32.totalorder %s157, %s159
      %p166 = scmp.eq.s32.totalorder %s23, 1
      %p167 = por %p165, %p166
      %p168 = scmp.ne.s32.totalorder %s159, %s160
      %p169 = scmp.eq.s32.totalorder %s23, 0
      %p170 = por %p168, %p169
      %p171 = scmp.ne.s32.totalorder %s159, %s160
      %p172 = scmp.eq.s32.totalorder %s24, 1
      %p173 = por %p171, %p172
      %p175 = scmp.ne.s32.totalorder %s160, %s174
      %p176 = scmp.eq.s32.totalorder %s24, 0
      %p177 = por %p175, %p176
      %s178 = ssub.s32 %s18, %s25
      %p179 = scmp.eq.s32.totalorder %s178, 0
      %s181 = sadd.s32 %s180, 1
      %s182 = scalar_select %p179, %s180, %s181
      %p185 = pneg %p179
      %p186 = scmp.eq.s32.totalorder %s18, 1
      %p187 = por %p185, %p186
      %p188 = scmp.ne.s32.totalorder %s180, %s183
      %p189 = scmp.eq.s32.totalorder %s18, 0
      %p190 = por %p188, %p189
      %p191 = scmp.ne.s32.totalorder %s180, %s183
      %p192 = scmp.eq.s32.totalorder %s23, 1
      %p193 = por %p191, %p192
      %p194 = scmp.ne.s32.totalorder %s183, %s184
      %p195 = scmp.eq.s32.totalorder %s23, 0
      %p196 = por %p194, %p195
      %p197 = scmp.ne.s32.totalorder %s183, %s184
      %p198 = scmp.eq.s32.totalorder %s24, 1
      %p199 = por %p197, %p198
      %p201 = scmp.ne.s32.totalorder %s184, %s200
      %p202 = scmp.eq.s32.totalorder %s24, 0
      %p203 = por %p201, %p202
      %p204 = scmp.le.s32.totalorder 1, %s18
      %p205 = scmp.lt.s32.totalorder %s18, 3
      %p206 = pnand %p204, %p205
      %p207 = pneg %p206
      // Predicated region
      $region9: #{tpu_custom_call.1} parent=5 // pred_check
        _
      $region10: #{tpu_custom_call.1} parent=5 // pred_check_branch
        %209 = sbr.rel (%p206) target = $region12
      $region11: #{tpu_custom_call.1} parent=5 // pred_region
        %s210 = ssub.s32 %s18, 1
        // Predicated region
        $region13: #{tpu_custom_call.1} parent=11 // pred_check
          %p211 = pneg %p65
        $region14: #{tpu_custom_call.1} parent=11 // pred_check_branch
          %213 = sbr.rel (%p211) target = $region16
        $region15: #{tpu_custom_call.1} parent=11 // pred_region
          _
        $region16: #{tpu_custom_call.1} parent=11 // pred_fallthru
          _
        // Predicated region
        $region17: #{tpu_custom_call.1} parent=11 // pred_check
          %p214 = pneg %p86
        $region18: #{tpu_custom_call.1} parent=11 // pred_check_branch
          %216 = sbr.rel (%p214) target = $region20
        $region19: #{tpu_custom_call.1} parent=11 // pred_region
          _
        $region20: #{tpu_custom_call.1} parent=11 // pred_fallthru
          _
        // Predicated region
        $region21: #{tpu_custom_call.1} parent=11 // pred_check
          %p217 = pneg %p107
        $region22: #{tpu_custom_call.1} parent=11 // pred_check_branch
          %219 = sbr.rel (%p217) target = $region24
        $region23: #{tpu_custom_call.1} parent=11 // pred_region
          %221 = vsyncadd [#allocation3], 0
          %s222 = sshll.u32 %s3, 4
          %s223 = int_to_ptr.hbm [resolvable:$true] %s222
          %s224 = sshll.u32 [#allocation2], 4
          %s225 = int_to_ptr.vmem [resolvable:$true] %s224
          %230 = dma.hbm_to_vmem [thread:$0]  %s223, 1024, %s225, [#allocation3], 64, 64, 4
        $region24: #{tpu_custom_call.1} parent=11 // pred_fallthru
          _
        // Predicated region
        $region25: #{tpu_custom_call.1} parent=11 // pred_check
          %p231 = pneg %p128
        $region26: #{tpu_custom_call.1} parent=11 // pred_check_branch
          %233 = sbr.rel (%p231) target = $region28
        $region27: #{tpu_custom_call.1} parent=11 // pred_region
          _
        $region28: #{tpu_custom_call.1} parent=11 // pred_fallthru
          _
        // Predicated region
        $region29: #{tpu_custom_call.1} parent=11 // pred_check
          %p234 = pneg %p149
        $region30: #{tpu_custom_call.1} parent=11 // pred_check_branch
          %236 = sbr.rel (%p234) target = $region32
        $region31: #{tpu_custom_call.1} parent=11 // pred_region
          %238 = vsyncadd [#allocation6], 0
          %s239 = sshll.u32 %s5, 4
          %s240 = int_to_ptr.hbm [resolvable:$true] %s239
          %s241 = sshll.u32 [#allocation5], 4
          %s242 = int_to_ptr.vmem [resolvable:$true] %s241
          %247 = dma.hbm_to_vmem [thread:$0]  %s240, 1024, %s242, [#allocation6], 64, 64, 4
        $region32: #{tpu_custom_call.1} parent=11 // pred_fallthru
          _
        // Predicated region
        $region33: #{tpu_custom_call.1} parent=11 // pred_check
          %p248 = pneg %p170
        $region34: #{tpu_custom_call.1} parent=11 // pred_check_branch
          %250 = sbr.rel (%p248) target = $region36
        $region35: #{tpu_custom_call.1} parent=11 // pred_region
          _
        $region36: #{tpu_custom_call.1} parent=11 // pred_fallthru
          _
      $region12: #{tpu_custom_call.1} parent=5 // pred_fallthru
        _
      %p251 = scmp.lt.s32.totalorder %s18, 2
      // Predicated region
      $region37: #{tpu_custom_call.1} parent=5 // pred_check
        %p252 = pneg %p251
      $region38: #{tpu_custom_call.1} parent=5 // pred_check_branch
        %254 = sbr.rel (%p252) target = $region40
      $region39: #{tpu_custom_call.1} parent=5 // pred_region
        // Predicated region
        $region41: #{tpu_custom_call.1} parent=39 // pred_check
          %p255 = pneg %p38
        $region42: #{tpu_custom_call.1} parent=39 // pred_check_branch
          %257 = sbr.rel (%p255) target = $region44
        $region43: #{tpu_custom_call.1} parent=39 // pred_region
          %s258 = smul.u32 4, %s18
          %p259 = scmp.lt.s32.totalorder %s258, 7
          %s260 = scalar_select %p259, %s258, 7
          %s261 = smul.addr %s260, 4
          %s262 = scalar_lea.vmem %s0, %s261
          %s263 = smul.u32 4, %s18
        $region44: #{tpu_custom_call.1} parent=39 // pred_fallthru
          _
      $region40: #{tpu_custom_call.1} parent=5 // pred_fallthru
        _
      %p264 = scmp.le.s32.totalorder 1, %s18
      %p265 = scmp.lt.s32.totalorder %s18, 3
      %p266 = pnand %p264, %p265
      %p267 = pneg %p266
      // Predicated region
      $region45: #{tpu_custom_call.1} parent=5 // pred_check
        _
      $region46: #{tpu_custom_call.1} parent=5 // pred_check_branch
        %269 = sbr.rel (%p266) target = $region48
      $region47: #{tpu_custom_call.1} parent=5 // pred_region
        %s270 = ssub.s32 %s18, 1
        // Predicated region
        $region49: #{tpu_custom_call.1} parent=47 // pred_check
          %p271 = pneg %p107
        $region50: #{tpu_custom_call.1} parent=47 // pred_check_branch
          %273 = sbr.rel (%p271) target = $region52
        $region51: #{tpu_custom_call.1} parent=47 // pred_region
          %275 = dma.done [#allocation3], 1024
        $region52: #{tpu_custom_call.1} parent=47 // pred_fallthru
          _
        // Predicated region
        $region53: #{tpu_custom_call.1} parent=47 // pred_check
          %p276 = pneg %p149
        $region54: #{tpu_custom_call.1} parent=47 // pred_check_branch
          %278 = sbr.rel (%p276) target = $region56
        $region55: #{tpu_custom_call.1} parent=47 // pred_region
          %280 = dma.done [#allocation6], 1024
        $region56: #{tpu_custom_call.1} parent=47 // pred_fallthru
          _
        %s281 = smul.u32 4, %s23
        %p282 = scmp.lt.s32.totalorder %s281, 7
        %s283 = scalar_select %p282, %s281, 7
        %s284 = smul.addr %s283, 4
        %s285 = scalar_lea.vmem %s0, %s284
        %p286 = pneg %p44
        %p287 = pneg %p41
        %p288 = pneg %p65
        %p289 = pneg %p62
        %p290 = pneg %p86
        %p291 = pneg %p83
        %p292 = pneg %p107
        %p293 = pneg %p104
        %p294 = pneg %p128
        %p295 = pneg %p125
        %p296 = pneg %p149
        %p297 = pneg %p146
        %p298 = pneg %p170
        %p299 = pneg %p167
        %p300 = pneg %p196
        %p301 = pneg %p193
        %s302 = sand.u32 %s183, 1
        %s303 = scalar_lea.sflag [#allocation4], %s302
        %s304 = sand.u32 %s183, 1
        %s305 = smul.addr %s304, 32
        %s306 = scalar_lea.vmem [#allocation7], %s305
        %s307 = smul.u32 4, %s23
        %p308 = scmp.lt.s32.totalorder %s307, 7
        %s309 = scalar_select %p308, %s307, 7
        %s310 = smul.addr %s309, 4
        %s311 = scalar_lea.vmem %s0, %s310
        %s312 = smul.u32 4, %s23
        %s313 = smul.u32 4, %s23
        %v315 = vld [vmem:[%s311] sm:$0xf]
        %v316 = vld [vmem:[%s311 + $0x4] sm:$0xf]
        %v317 = vld [vmem:[%s311 + $0x8] sm:$0xf]
        %v318 = vld [vmem:[%s311 + $0xc] sm:$0xf]
        %v319 = vld [vmem:[%s1] sm:$0xf]
        %v320 = vld [vmem:[%s1 + $0x4] sm:$0xf]
        %v321 = vld [vmem:[%s2] sm:$0x1]
        %v323 = vperm.slane %v321, 0
        %v329 = vunpack.c.l.b16 %v315
        %v330 = vunpack.c.l.b16 %v316
        %v331 = vunpack.c.l.b16 %v317
        %v332 = vunpack.c.l.b16 %v318
        %v333 = vpack.c.b16 %v330, %v329
        %v334 = vpack.c.b16 %v332, %v331
        %v337 = vunpack.c.l.b16 %v319
        %v338 = vunpack.c.l.b16 %v320
        %v339 = vpack.c.b16 %v338, %v337
        %vm341 = vcmask 130048
        %v343 = vsel %vm341, %v333, 0
        %v346 = vsel %vm341, %v334, 0
        %348 = vmatpush.bf16.msra.mxu0 0
        %349 = vmatpush.bf16.msra.mxu0 0
        %350 = vmatpush.bf16.msra.mxu0 0
        %351 = vmatpush.bf16.msra.mxu0 0
        %352 = vmatpush.bf16.msra.mxu0 0
        %353 = vmatpush.bf16.msra.mxu0 0
        %354 = vmatpush.bf16.msra.mxu0 0
        %355 = vmatpush.bf16.msra.mxu0 %v339
        %356 = vmatmul.bf16.gmra.mxu0 %v343
        %v357 = vpop.f32.mrf.mxu0
        %v358 = vadd.f32 %v323, %v357
        %v359 = vpop.f32.mrf.mxu0
        %v360 = vadd.f32 %v323, %v359
        %361 = vmatmul.bf16.gmra.mxu0 %v346
        %v362 = vpop.f32.mrf.mxu0
        %v363 = vadd.f32 %v323, %v362
        %v364 = vpop.f32.mrf.mxu0
        %v365 = vadd.f32 %v323, %v364
        %366 = vdwg.mxu0
        %v367 = vmax.f32 %v358, 0.0
        %v368 = vmax.f32 %v360, 0.0
        %v369 = vmax.f32 %v363, 0.0
        %v370 = vmax.f32 %v365, 0.0
        %v371 = vpack.c.bf16 %v368, %v367
        %v372 = vpack.c.bf16 %v370, %v369
        %v373 = vld [vmem:[#allocation2] sm:$0xf]
        %v374 = vld [vmem:[#allocation2 + $0x4] sm:$0xf]
        %v375 = vld [vmem:[#allocation2 + $0x8] sm:$0xf]
        %v376 = vld [vmem:[#allocation2 + $0xc] sm:$0xf]
        %v377 = vld [vmem:[#allocation2 + $0x10] sm:$0xf]
        %v378 = vld [vmem:[#allocation2 + $0x14] sm:$0xf]
        %v379 = vld [vmem:[#allocation2 + $0x18] sm:$0xf]
        %v380 = vld [vmem:[#allocation2 + $0x1c] sm:$0xf]
        %v381 = vld [vmem:[#allocation2 + $0x20] sm:$0xf]
        %v382 = vld [vmem:[#allocation2 + $0x24] sm:$0xf]
        %v383 = vld [vmem:[#allocation2 + $0x28] sm:$0xf]
        %v384 = vld [vmem:[#allocation2 + $0x2c] sm:$0xf]
        %v385 = vld [vmem:[#allocation2 + $0x30] sm:$0xf]
        %v386 = vld [vmem:[#allocation2 + $0x34] sm:$0xf]
        %v387 = vld [vmem:[#allocation2 + $0x38] sm:$0xf]
        %v388 = vld [vmem:[#allocation2 + $0x3c] sm:$0xf]
        %v389 = vld [vmem:[%s4] sm:$0x1]
        %v391 = vperm.slane %v389, 0
        %v409 = vunpack.c.l.b16 %v373
        %v410 = vunpack.c.l.b16 %v374
        %v411 = vunpack.c.l.b16 %v375
        %v412 = vunpack.c.l.b16 %v376
        %v413 = vunpack.c.l.b16 %v377
        %v414 = vunpack.c.l.b16 %v378
        %v415 = vunpack.c.l.b16 %v379
        %v416 = vunpack.c.l.b16 %v380
        %v417 = vunpack.c.l.b16 %v381
        %v418 = vunpack.c.l.b16 %v382
        %v419 = vunpack.c.l.b16 %v383
        %v420 = vunpack.c.l.b16 %v384
        %v421 = vunpack.c.l.b16 %v385
        %v422 = vunpack.c.l.b16 %v386
        %v423 = vunpack.c.l.b16 %v387
        %v424 = vunpack.c.l.b16 %v388
        %v425 = vpack.c.b16 %v410, %v409
        %v426 = vpack.c.b16 %v412, %v411
        %v427 = vpack.c.b16 %v414, %v413
        %v428 = vpack.c.b16 %v416, %v415
        %v429 = vpack.c.b16 %v418, %v417
        %v430 = vpack.c.b16 %v420, %v419
        %v431 = vpack.c.b16 %v422, %v421
        %v432 = vpack.c.b16 %v424, %v423
        %441 = vmatpush.bf16.msra.mxu0 %v432
        %442 = vmatpush.bf16.msra.mxu0 %v431
        %443 = vmatpush.bf16.msra.mxu0 %v430
        %444 = vmatpush.bf16.msra.mxu0 %v429
        %445 = vmatpush.bf16.msra.mxu0 %v428
        %446 = vmatpush.bf16.msra.mxu0 %v427
        %447 = vmatpush.bf16.msra.mxu0 %v426
        %448 = vmatpush.bf16.msra.mxu0 %v425
        %449 = vmatmul.bf16.gmra.mxu0 %v371
        %v450 = vpop.f32.mrf.mxu0
        %v451 = vadd.f32 %v391, %v450
        %v452 = vpop.f32.mrf.mxu0
        %v453 = vadd.f32 %v391, %v452
        %454 = vmatmul.bf16.gmra.mxu0 %v372
        %v455 = vpop.f32.mrf.mxu0
        %v456 = vadd.f32 %v391, %v455
        %v457 = vpop.f32.mrf.mxu0
        %v458 = vadd.f32 %v391, %v457
        %459 = vdwg.mxu0
        %v460 = vmax.f32 %v451, 0.0
        %v461 = vmax.f32 %v453, 0.0
        %v462 = vmax.f32 %v456, 0.0
        %v463 = vmax.f32 %v458, 0.0
        %v464 = vpack.c.bf16 %v461, %v460
        %v465 = vpack.c.bf16 %v463, %v462
        %v466 = vld [vmem:[#allocation5] sm:$0xf]
        %v467 = vld [vmem:[#allocation5 + $0x4] sm:$0xf]
        %v468 = vld [vmem:[#allocation5 + $0x8] sm:$0xf]
        %v469 = vld [vmem:[#allocation5 + $0xc] sm:$0xf]
        %v470 = vld [vmem:[#allocation5 + $0x10] sm:$0xf]
        %v471 = vld [vmem:[#allocation5 + $0x14] sm:$0xf]
        %v472 = vld [vmem:[#allocation5 + $0x18] sm:$0xf]
        %v473 = vld [vmem:[#allocation5 + $0x1c] sm:$0xf]
        %v474 = vld [vmem:[#allocation5 + $0x20] sm:$0xf]
        %v475 = vld [vmem:[#allocation5 + $0x24] sm:$0xf]
        %v476 = vld [vmem:[#allocation5 + $0x28] sm:$0xf]
        %v477 = vld [vmem:[#allocation5 + $0x2c] sm:$0xf]
        %v478 = vld [vmem:[#allocation5 + $0x30] sm:$0xf]
        %v479 = vld [vmem:[#allocation5 + $0x34] sm:$0xf]
        %v480 = vld [vmem:[#allocation5 + $0x38] sm:$0xf]
        %v481 = vld [vmem:[#allocation5 + $0x3c] sm:$0xf]
        %v482 = vld [vmem:[%s6] sm:$0x1]
        %v484 = vperm.slane %v482, 0
        %v502 = vunpack.c.l.b16 %v466
        %v503 = vunpack.c.l.b16 %v467
        %v504 = vunpack.c.l.b16 %v468
        %v505 = vunpack.c.l.b16 %v469
        %v506 = vunpack.c.l.b16 %v470
        %v507 = vunpack.c.l.b16 %v471
        %v508 = vunpack.c.l.b16 %v472
        %v509 = vunpack.c.l.b16 %v473
        %v510 = vunpack.c.l.b16 %v474
        %v511 = vunpack.c.l.b16 %v475
        %v512 = vunpack.c.l.b16 %v476
        %v513 = vunpack.c.l.b16 %v477
        %v514 = vunpack.c.l.b16 %v478
        %v515 = vunpack.c.l.b16 %v479
        %v516 = vunpack.c.l.b16 %v480
        %v517 = vunpack.c.l.b16 %v481
        %v518 = vpack.c.b16 %v503, %v502
        %v519 = vpack.c.b16 %v505, %v504
        %v520 = vpack.c.b16 %v507, %v506
        %v521 = vpack.c.b16 %v509, %v508
        %v522 = vpack.c.b16 %v511, %v510
        %v523 = vpack.c.b16 %v513, %v512
        %v524 = vpack.c.b16 %v515, %v514
        %v525 = vpack.c.b16 %v517, %v516
        %534 = vmatpush.bf16.msra.mxu0 %v525
        %535 = vmatpush.bf16.msra.mxu0 %v524
        %536 = vmatpush.bf16.msra.mxu0 %v523
        %537 = vmatpush.bf16.msra.mxu0 %v522
        %538 = vmatpush.bf16.msra.mxu0 %v521
        %539 = vmatpush.bf16.msra.mxu0 %v520
        %540 = vmatpush.bf16.msra.mxu0 %v519
        %541 = vmatpush.bf16.msra.mxu0 %v518
        %542 = vmatmul.bf16.gmra.mxu0 %v464
        %v543 = vpop.f32.mrf.mxu0
        %v544 = vadd.f32 %v484, %v543
        %v545 = vpop.f32.mrf.mxu0
        %v546 = vadd.f32 %v484, %v545
        %547 = vmatmul.bf16.gmra.mxu0 %v465
        %v548 = vpop.f32.mrf.mxu0
        %v549 = vadd.f32 %v484, %v548
        %v550 = vpop.f32.mrf.mxu0
        %v551 = vadd.f32 %v484, %v550
        %552 = vdwg.mxu0
        %553 = vmax.xlane.f32.xlu0 %v544
        %v554 = vpop.xlane.xlu0 %553
        %555 = vmax.xlane.f32.xlu0 %v546
        %v556 = vpop.xlane.xlu0 %555
        %557 = vmax.xlane.f32.xlu0 %v549
        %v558 = vpop.xlane.xlu0 %557
        %559 = vmax.xlane.f32.xlu0 %v551
        %v560 = vpop.xlane.xlu0 %559
        %v561 = vsub.f32 %v544, %v554
        %v562 = vsub.f32 %v546, %v556
        %v563 = vsub.f32 %v549, %v558
        %v564 = vsub.f32 %v551, %v560
        %v565 = vmul.f32 %v561, 1.442695
        %v566 = vpow.pop %v565
        %v567 = vmul.f32 %v562, 1.442695
        %v568 = vpow.pop %v567
        %v569 = vmul.f32 %v563, 1.442695
        %v570 = vpow.pop %v569
        %v571 = vmul.f32 %v564, 1.442695
        %v572 = vpow.pop %v571
        %573 = vadd.xlane.f32.xlu0 %v566
        %v574 = vpop.xlane.xlu0 %573
        %575 = vadd.xlane.f32.xlu0 %v568
        %v576 = vpop.xlane.xlu0 %575
        %577 = vadd.xlane.f32.xlu0 %v570
        %v578 = vpop.xlane.xlu0 %577
        %579 = vadd.xlane.f32.xlu0 %v572
        %v580 = vpop.xlane.xlu0 %579
        %v581 = vrcp.pop %v574
        %v582 = vrcp.pop %v576
        %v583 = vrcp.pop %v578
        %v584 = vrcp.pop %v580
        %v585 = vmul.f32 %v566, %v581
        %v586 = vmul.f32 %v568, %v582
        %v587 = vmul.f32 %v570, %v583
        %v588 = vmul.f32 %v572, %v584
        %589 = vst [vmem:[%s306] sm:$0xff] %v585
        %590 = vst [vmem:[%s306 + $0x8] sm:$0xff] %v586
        %591 = vst [vmem:[%s306 + $0x10] sm:$0xff] %v587
        %592 = vst [vmem:[%s306 + $0x18] sm:$0xff] %v588
        %s593 = sand.u32 %s183, 1
        %s594 = scalar_lea.sflag [#allocation4], %s593
        %s595 = sand.u32 %s183, 1
        %s596 = smul.addr %s595, 32
        %s597 = scalar_lea.vmem [#allocation7], %s596
        // Predicated region
        $region57: #{tpu_custom_call.1} parent=47 // pred_check
          %p598 = pneg %p193
        $region58: #{tpu_custom_call.1} parent=47 // pred_check_branch
          %600 = sbr.rel (%p598) target = $region60
        $region59: #{tpu_custom_call.1} parent=47 // pred_region
          %s601 = smul.u32 4, %s23
          %603 = vsyncadd %s594, 0
          %s604 = smul.addr %s601, 8
          %s605 = scalar_lea.hbm %s7, %s604
          %s606 = sshll.u32 %s597, 4
          %s607 = int_to_ptr.vmem [resolvable:$true] %s606
          %s608 = sshll.u32 %s605, 4
          %s609 = int_to_ptr.hbm [resolvable:$true] %s608
          %614 = dma.vmem_to_hbm [thread:$0]  %s607, 512, %s609, %s594, 128, 128, 8
        $region60: #{tpu_custom_call.1} parent=47 // pred_fallthru
          _
      $region48: #{tpu_custom_call.1} parent=5 // pred_fallthru
        _
      %p615 = scmp.le.s32.totalorder 2, %s18
      // Predicated region
      $region61: #{tpu_custom_call.1} parent=5 // pred_check
        %p616 = pneg %p615
      $region62: #{tpu_custom_call.1} parent=5 // pred_check_branch
        %618 = sbr.rel (%p616) target = $region64
      $region63: #{tpu_custom_call.1} parent=5 // pred_region
        %s619 = ssub.s32 %s18, 2
        // Predicated region
        $region65: #{tpu_custom_call.1} parent=63 // pred_check
          %p620 = pneg %p199
        $region66: #{tpu_custom_call.1} parent=63 // pred_check_branch
          %622 = sbr.rel (%p620) target = $region68
        $region67: #{tpu_custom_call.1} parent=63 // pred_region
          %s623 = sand.u32 %s184, 1
          %s624 = scalar_lea.sflag [#allocation4], %s623
          %s625 = sand.u32 %s184, 1
          %s626 = smul.addr %s625, 32
          %s627 = scalar_lea.vmem [#allocation7], %s626
          %629 = dma.done %s624, 512
        $region68: #{tpu_custom_call.1} parent=63 // pred_fallthru
          _
      $region64: #{tpu_custom_call.1} parent=5 // pred_fallthru
        _
    $region6: #{tpu_custom_call.1} parent=1 // loop_footer
      %s22 = sadd.s32 1, %s18
    $region7: #{tpu_custom_call.1} parent=1 // loop_footer_branch
      %17 = sbr.rel target = $region3
    $region8: #{tpu_custom_call.1} parent=1 // loop_exit
      _
    %630 = vsyncpa [#allocation3], 1
    %s631 = scalar_lea.sflag [#allocation3], 1
    %632 = vsyncpa %s631, 1
    %633 = vsyncpa [#allocation6], 1
    %634 = vsyncpa [#allocation4], 1
    %s635 = scalar_lea.sflag [#allocation4], 1
    %636 = vsyncpa %s635, 1

</llo_original>
